<compile_context>
chip_gen: v5e
topology: v5e:2x2
jax: 0.10.0
libtpu: 0.0.40
codegen_flags: <defaults>
</compile_context>

<pallas_src>
import functools
import math

import jax
import jax.numpy as jnp
from jax import lax
from jax.experimental import pallas as pl
from jax.experimental.pallas import tpu as pltpu

_MIB = 1 << 20
_MXU_MAX_LANE = 1024     # widest lane slab allowed for the block-diagonal MXU path
_ROTATE_MAX_DPS = 8      # at/below this, O(dps) XLU rolls beat an MXU matmul


def _group_sum_bcast(sq, dps):
    """Sum `sq` over contiguous dps-aligned lane groups; broadcast back lane-dense."""
    _, f = sq.shape
    if dps == f:
        return jnp.sum(sq, axis=-1, keepdims=True)                # (r, 1); broadcast is free
    lane = lax.broadcasted_iota(jnp.int32, (1, f), 1)              # (1, f) masks (sublane bcast)
    if (dps & (dps - 1)) == 0:
        # Power-of-two subspace: hypercube butterfly, log2(dps) XLU rolls.
        s = sq
        k = 1
        while k < dps:
            down = pltpu.roll(s, f - k, axis=1)                    # lane j -> s[j + k]
            up = pltpu.roll(s, k, axis=1)                          # lane j -> s[j - k]
            s = s + jnp.where((lane & k) == 0, down, up)           # partner = lane ^ k
            k *= 2
        return s
    # Small / exotic non-power-of-two dps: group rotation, dps-1 XLU rolls.
    # TODO(synk): O(dps) steps; only reached for small dps or dps with lcm(dps,128) > _MXU_MAX_LANE.
    p = lane % dps
    s = sq
    for k in range(1, dps):
        down = pltpu.roll(sq, f - k, axis=1)                       # sq[j + k]
        wrap = pltpu.roll(sq, dps - k, axis=1)                     # sq[j + k - dps]
        s = s + jnp.where(p < dps - k, down, wrap)
    return s


def _clipnorm_kernel(x_ref, o_ref, *, max_norm, dps):
    x = x_ref[...].astype(jnp.float32)                             # (block_rows, f), lane-dense
    s = _group_sum_bcast(x * x, dps)                               # per-subspace ||.||^2
    # min(max_norm / ||x||, 1); ||x|| == 0 -> inf -> min picks 1 (matches torch).
    scale = jnp.minimum(max_norm / jnp.sqrt(s), 1.0)
    o_ref[...] = (x * scale).astype(o_ref.dtype)


def _clipnorm_mxu_kernel(x_ref, g_ref, o_ref, *, max_norm):
    # Group sum via one matmul on the otherwise-idle MXU against a constant
    # block-diagonal 0/1 matrix.  Keep f32 in / f32 accumulate for norm precision.
    x = x_ref[...].astype(jnp.float32)
    s = jnp.dot(x * x, g_ref[...], preferred_element_type=jnp.float32)
    scale = jnp.minimum(max_norm / jnp.sqrt(s), 1.0)
    o_ref[...] = (x * scale).astype(o_ref.dtype)


def clip_norm(x, max_norm=15.0, dimensions_per_space=None, *,
              block_rows=None, target_block_bytes=None):
    """Pallas implementation of ClipNorm.forward.

    x: array of shape (*batch_dims, F). If dimensions_per_space is given, F must
    be divisible by it; the L2 norm is taken over each contiguous subspace of
    size dimensions_per_space, otherwise over the full last axis.
    """
    orig_shape = x.shape
    feat = int(orig_shape[-1])
    if x.size == 0 or feat == 0:
        return x
    dps = int(dimensions_per_space) if dimensions_per_space else feat
    assert feat % dps == 0, "last dim must be divisible by dimensions_per_space"

    total = int(x.size)
    itemsize = jnp.dtype(x.dtype).itemsize
    sublane = 8 * max(1, 4 // itemsize)            # 8 (f32) / 16 (bf16) / 32 (int8, fp8)

    # ---- choose lane width f (always a multiple of dps; subspaces never straddle rows)
    lcm = dps * 128 // math.gcd(dps, 128)
    use_mxu = False
    if 128 % dps == 0:
        f = 128                                    # in-vreg rolls, per-vreg constant masks
    elif dps % 128 == 0:
        f = dps                                    # one subspace per row -> plain lane sum
    elif lcm <= _MXU_MAX_LANE:
        f = lcm                                    # lane-dense (multiple of 128)
        use_mxu = dps > _ROTATE_MAX_DPS            # big subspace: 1 matmul beats O(dps) rolls
    else:
        # Exotic dps: stay correct; stores may be masked (lane width not 128-multiple).
        f = dps if dps >= 128 else dps * pl.cdiv(128, dps)

    # ---- pad the flat length to whole rows of width f (zero subspaces are harmless)
    rows = -(-total // f)
    if use_mxu:
        rows = max(rows, sublane)                  # keep the MXU lhs at least one sublane tile
    padded_total = rows * f
    pad = padded_total - total

    xf = x.reshape(-1)
    if pad:
        xf = jnp.pad(xf, (0, pad))                 # pad starts on a subspace boundary
    x2 = xf.reshape(rows, f)

    # ---- VMEM budget / block size (v5e/v6e: 128 MiB, v7x: 64 MiB per TC)
    try:
        info = pltpu.get_tpu_info()
        vmem_cap = int(getattr(info, "vmem_capacity_bytes", 64 * _MIB))
    except Exception:
        vmem_cap = 64 * _MIB
    vmem_limit = min(64 * _MIB, max(32 * _MIB, vmem_cap - 16 * _MIB))
    if target_block_bytes is None:
        target_block_bytes = 4 * _MIB if vmem_cap >= 96 * _MIB else 2 * _MIB

    if block_rows is None:
        block_rows = max(1, target_block_bytes // (f * itemsize))
    block_rows = max(sublane, (block_rows // sublane) * sublane)
    if rows >= 2 * sublane:
        # Guarantee >= 2 row blocks so ("parallel",) shards across both v7x TensorCores.
        half = max(sublane, (rows // 2 // sublane) * sublane)
        block_rows = min(block_rows, half)
    if block_rows >= rows:
        block_rows = rows                          # single full-extent block (always legal)
    # TODO(synk): if one sublane-tall block (sublane*f*itemsize) ever exceeds the VMEM
    # budget (enormous dps), tile the feature axis with a second grid dimension.

    grid = pl.cdiv(rows, block_rows)               # ragged last block handled by Pallas
    x_spec = pl.BlockSpec((block_rows, f), lambda i: (i, 0))
    out_spec = pl.BlockSpec((block_rows, f), lambda i: (i, 0))
    cparams = pltpu.CompilerParams(
        dimension_semantics=("parallel",),
        vmem_limit_bytes=vmem_limit,
    )

    if use_mxu:
        gidx = jnp.arange(f, dtype=jnp.int32) // dps
        gmat = (gidx[:, None] == gidx[None, :]).astype(jnp.float32)   # block-diagonal 0/1
        kernel = functools.partial(_clipnorm_mxu_kernel, max_norm=float(max_norm))
        out = pl.pallas_call(
            kernel,
            out_shape=jax.ShapeDtypeStruct((rows, f), x.dtype),
            grid_spec=pltpu.PrefetchScalarGridSpec(
                num_scalar_prefetch=0,
                grid=(grid,),
                in_specs=[x_spec,
                          pl.BlockSpec((f, f), lambda i: (0, 0))],    # VMEM-resident constant
                out_specs=out_spec,
            ),
            compiler_params=cparams,
        )(x2, gmat)
    else:
        kernel = functools.partial(_clipnorm_kernel, max_norm=float(max_norm), dps=dps)
        out = pl.pallas_call(
            kernel,
            out_shape=jax.ShapeDtypeStruct((rows, f), x.dtype),
            grid_spec=pltpu.PrefetchScalarGridSpec(
                num_scalar_prefetch=0,
                grid=(grid,),
                in_specs=[x_spec],
                out_specs=out_spec,
            ),
            compiler_params=cparams,
        )(x2)

    out = out.reshape(-1)
    if pad:
        out = out[:total]
    return out.reshape(orig_shape)


def _clip_norm_ref(x, max_norm, dimensions_per_space):
    # Pure-JAX reference mirroring the PyTorch forward.
    shape = x.shape
    if dimensions_per_space:
        rs = x.reshape(*shape[:-1], shape[-1] // dimensions_per_space,
                       dimensions_per_space)
    else:
        rs = x
    rs32 = rs.astype(jnp.float32)
    l2 = jnp.linalg.norm(rs32, axis=-1, keepdims=True)
    clipped = jnp.minimum(max_norm / l2, 1.0) * rs32
    return clipped.reshape(shape).astype(x.dtype)


if __name__ == "__main__":
    key = jax.random.PRNGKey(0)
    ks = jax.random.split(key, 7)
    max_norm = 15.0

    # (input, dps, explicit block_rows, atol, rtol)
    cases = []
    # 1) dps=8 power-of-two butterfly, lane-dense 128 slab, no padding.
    cases.append((20.0 * jax.random.normal(ks[0], (2, 4, 32), dtype=jnp.float32),
                  8, None, 1e-4, 1e-5))
    # 2) dps=None -> full-row norms (feat=16); exercises zero-row padding.
    cases.append((20.0 * jax.random.normal(ks[1], (2, 16), dtype=jnp.float32),
                  None, None, 1e-4, 1e-5))
    # 3) dps=16 with a small explicit block: multi-block grid + ragged last tile.
    cases.append((20.0 * jax.random.normal(ks[2], (5, 8, 64), dtype=jnp.float32),
                  16, 16, 1e-4, 1e-5))
    # 4) small non-power-of-two dps=3: rotation path, f = lcm(3,128) = 384.
    cases.append((20.0 * jax.random.normal(ks[3], (4, 24), dtype=jnp.float32),
                  3, None, 1e-4, 1e-5))
    # 5) larger non-power-of-two dps=24: MXU block-diagonal matmul path.
    cases.append((20.0 * jax.random.normal(ks[4], (2, 5, 48), dtype=jnp.float32),
                  24, None, 5e-3, 2e-3))
    # 6) bf16 input, dps=4 butterfly, zero-row padding, 16-row sublane tiling.
    cases.append(((20.0 * jax.random.normal(ks[5], (3, 5, 40), dtype=jnp.float32)
                   ).astype(jnp.bfloat16), 4, None, 5e-2, 2e-2))
    # 7) dps=None with feat=128: plain per-row lane-sum path.
    cases.append((20.0 * jax.random.normal(ks[6], (7, 128), dtype=jnp.float32),
                  None, None, 1e-4, 1e-5))

    outs = []
    for xin, dps, brows, _, _ in cases:
        outs.append(clip_norm(xin, max_norm=max_norm,
                              dimensions_per_space=dps, block_rows=brows))
    jax.block_until_ready(outs)

    for (xin, dps, _, atol, rtol), y in zip(cases, outs):
        assert y.shape == xin.shape and y.dtype == xin.dtype
        r = _clip_norm_ref(xin, max_norm, dps)
        y32 = y.astype(jnp.float32)
        r32 = r.astype(jnp.float32)
        assert jnp.allclose(y32, r32, atol=atol, rtol=rtol), (
            dps, float(jnp.max(jnp.abs(y32 - r32))))

    print("KERNEL_OK")
</pallas_src>

<mosaic_0001>
module attributes {stable_mosaic.version = 11 : i64} {
  func.func @_clipnorm_kernel(%arg0: i32, %arg1: memref<2x128xf32, #tpu.memory_space<vmem>>, %arg2: memref<2x128xf32, #tpu.memory_space<vmem>>) attributes {dimension_semantics = [#tpu.dimension_semantics<parallel>], iteration_bounds = array<i64: 1>, scalar_prefetch = 0 : i64, scratch_operands = 0 : i64, tpu.core_type = #tpu.core_type<tc>, window_params = [{transform_indices = @transform_0, window_bounds = array<i64: 2, 128>}, {transform_indices = @transform_1, window_bounds = array<i64: 2, 128>}]} {
    %c0 = arith.constant 0 : index
    %c0_0 = arith.constant 0 : index
    %0 = vector.load %arg1[%c0, %c0_0] : memref<2x128xf32, #tpu.memory_space<vmem>>, vector<2x128xf32>
    %1 = arith.mulf %0, %0 : vector<2x128xf32>
    %2 = tpu.iota {dimensions = array<i32: 1>} : vector<1x128xi32>
    %c127_i32 = arith.constant 127 : i32
    %3 = tpu.dynamic_rotate %1 by %c127_i32 dim 1 : vector<2x128xf32>, i32 -> vector<2x128xf32>
    %c1_i32 = arith.constant 1 : i32
    %4 = tpu.dynamic_rotate %1 by %c1_i32 dim 1 : vector<2x128xf32>, i32 -> vector<2x128xf32>
    %c1_i32_1 = arith.constant 1 : i32
    %5 = vector.broadcast %c1_i32_1 : i32 to vector<1x128xi32>
    %6 = arith.andi %2, %5 : vector<1x128xi32>
    %c0_i32 = arith.constant 0 : i32
    %7 = vector.broadcast %c0_i32 : i32 to vector<1x128xi32>
    %8 = arith.cmpi eq, %6, %7 : vector<1x128xi32>
    %9 = vector.shape_cast %8 : vector<1x128xi1> to vector<1x128xi1>
    %10 = vector.broadcast %9 : vector<1x128xi1> to vector<2x128xi1>
    %11 = arith.select %10, %3, %4 : vector<2x128xi1>, vector<2x128xf32>
    %12 = arith.addf %1, %11 : vector<2x128xf32>
    %c126_i32 = arith.constant 126 : i32
    %13 = tpu.dynamic_rotate %12 by %c126_i32 dim 1 : vector<2x128xf32>, i32 -> vector<2x128xf32>
    %c2_i32 = arith.constant 2 : i32
    %14 = tpu.dynamic_rotate %12 by %c2_i32 dim 1 : vector<2x128xf32>, i32 -> vector<2x128xf32>
    %c2_i32_2 = arith.constant 2 : i32
    %15 = vector.broadcast %c2_i32_2 : i32 to vector<1x128xi32>
    %16 = arith.andi %2, %15 : vector<1x128xi32>
    %c0_i32_3 = arith.constant 0 : i32
    %17 = vector.broadcast %c0_i32_3 : i32 to vector<1x128xi32>
    %18 = arith.cmpi eq, %16, %17 : vector<1x128xi32>
    %19 = vector.shape_cast %18 : vector<1x128xi1> to vector<1x128xi1>
    %20 = vector.broadcast %19 : vector<1x128xi1> to vector<2x128xi1>
    %21 = arith.select %20, %13, %14 : vector<2x128xi1>, vector<2x128xf32>
    %22 = arith.addf %12, %21 : vector<2x128xf32>
    %c124_i32 = arith.constant 124 : i32
    %23 = tpu.dynamic_rotate %22 by %c124_i32 dim 1 : vector<2x128xf32>, i32 -> vector<2x128xf32>
    %c4_i32 = arith.constant 4 : i32
    %24 = tpu.dynamic_rotate %22 by %c4_i32 dim 1 : vector<2x128xf32>, i32 -> vector<2x128xf32>
    %c4_i32_4 = arith.constant 4 : i32
    %25 = vector.broadcast %c4_i32_4 : i32 to vector<1x128xi32>
    %26 = arith.andi %2, %25 : vector<1x128xi32>
    %c0_i32_5 = arith.constant 0 : i32
    %27 = vector.broadcast %c0_i32_5 : i32 to vector<1x128xi32>
    %28 = arith.cmpi eq, %26, %27 : vector<1x128xi32>
    %29 = vector.shape_cast %28 : vector<1x128xi1> to vector<1x128xi1>
    %30 = vector.broadcast %29 : vector<1x128xi1> to vector<2x128xi1>
    %31 = arith.select %30, %23, %24 : vector<2x128xi1>, vector<2x128xf32>
    %32 = arith.addf %22, %31 : vector<2x128xf32>
    %33 = math.sqrt %32 : vector<2x128xf32>
    %cst = arith.constant 1.500000e+01 : f32
    %34 = vector.broadcast %cst : f32 to vector<2x128xf32>
    %35 = arith.divf %34, %33 : vector<2x128xf32>
    %cst_6 = arith.constant 1.000000e+00 : f32
    %36 = vector.broadcast %cst_6 : f32 to vector<2x128xf32>
    %37 = arith.minimumf %35, %36 : vector<2x128xf32>
    %38 = arith.mulf %0, %37 : vector<2x128xf32>
    %c0_7 = arith.constant 0 : index
    %c0_8 = arith.constant 0 : index
    %39 = vector.load %arg2[%c0_7, %c0_8] : memref<2x128xf32, #tpu.memory_space<vmem>>, vector<2x128xf32>
    tpu.vector_store %arg2[%c0_7, %c0_8], %38 {strides = array<i32>} : memref<2x128xf32, #tpu.memory_space<vmem>>, vector<2x128xf32>,
    return
  }
  func.func @transform_0(%arg0: i32) -> (i32, i32) {
    %c0_i32 = arith.constant 0 : i32
    %c0_i32_0 = arith.constant 0 : i32
    return %arg0, %c0_i32 : i32, i32
  }
  func.func @transform_1(%arg0: i32) -> (i32, i32) {
    %c0_i32 = arith.constant 0 : i32
    %c0_i32_0 = arith.constant 0 : i32
    return %arg0, %c0_i32 : i32, i32
  }
}

</mosaic_0001>

<llo_original>
// kernel: tpu_custom_call.1
$region0: #{tpu_custom_call.1}
  #allocation0 [shape = 'u32[]', space=smem, size = 0x4, offset = 0x4, fixed_abs, tag = 'smem constant byte address 0x4 - core index']
  #allocation1 [shape = 'u32[72,128]{1,0:T(1,128)}', space=vmem, size = 0x9000, scoped, tag = 'internal scratch']
  %s0 = inlined_call_operand.hbm [shape: f32[2,128], index: 0, kind: input, shape index: {}]
  %s1 = inlined_call_operand.hbm [shape: f32[2,128], index: 1, kind: output, shape index: {}]
  %s2 = sld [smem:[#allocation0]]
  $region18: #{tpu_custom_call.1} parent=0
    _
  %s4 = ssub.s32 1, %s2
  %s5 = scalar_select 0, %s4, %s2
  $region1: #{tpu_custom_call.1} parent=0
    #allocation2 [shape = 'u8[1024]{0}', space=vmem, size = 0x400, scoped, tag = 'input window, operand 0, single buffered']
    #allocation3 [shape = 's32[1]{0}', space=sflag, size = 0x4, scoped, tag = 'scoped memory for tpu_custom_call.1']
    #allocation4 [shape = 's32[1]{0}', space=sflag, size = 0x4, scoped, tag = 'scoped memory for tpu_custom_call.1']
    #allocation5 [shape = 'u8[1024]{0}', space=vmem, size = 0x400, scoped, tag = 'output window, operand 0, single buffered']
    %6 = vsyncpa [#allocation3], 0
    %7 = vsyncpa [#allocation4], 0
    // Predicated region
    $region2: #{tpu_custom_call.1} parent=1 // pred_check
      _
    $region3: #{tpu_custom_call.1} parent=1 // pred_check_branch
      %9 = sbr.rel (0) target = $region5
    $region4: #{tpu_custom_call.1} parent=1 // pred_region
      %11 = vsyncadd [#allocation3], 0
      %s13 = sshll.u32 %s0, 4
      %s14 = int_to_ptr.hbm [resolvable:$true] %s13
      %s15 = sshll.u32 [#allocation2], 4
      %s16 = int_to_ptr.vmem [resolvable:$true] %s15
      %18 = dma.hbm_to_vmem [thread:$0]  %s14, 32, %s16, [#allocation3]
    $region5: #{tpu_custom_call.1} parent=1 // pred_fallthru
      _
    // Predicated region
    $region6: #{tpu_custom_call.1} parent=1 // pred_check
      _
    $region7: #{tpu_custom_call.1} parent=1 // pred_check_branch
      %20 = sbr.rel (0) target = $region9
    $region8: #{tpu_custom_call.1} parent=1 // pred_region
      %22 = dma.done [#allocation3], 32
    $region9: #{tpu_custom_call.1} parent=1 // pred_fallthru
      _
    %v23 = vld [vmem:[#allocation2] sm:$0x3]
    %v24 = vmul.f32 %v23, %v23
    %v25 = vlaneseq
    %v26 = vand.u32 %v25, 127
    %27 = vrot.lane.b32.xlu0 %v24, 127
    %v28 = vpop.permute.xlu0 %27
    %29 = vrot.lane.b32.xlu0 %v24, 1
    %v30 = vpop.permute.xlu0 %29
    %v31 = vand.u32 %v26, 1
    %vm32 = vcmp.eq.s32.totalorder %v31, 0
    %v33 = vsel %vm32, 1, 0
    %vm34 = vcmp.eq.s32.totalorder %v33, 1
    %v35 = vsel %vm34, %v28, %v30
    %v36 = vadd.f32 %v24, %v35
    %37 = vrot.lane.b32.xlu0 %v36, 126
    %v38 = vpop.permute.xlu0 %37
    %39 = vrot.lane.b32.xlu0 %v36, 2
    %v40 = vpop.permute.xlu0 %39
    %v41 = vand.u32 %v26, 2
    %vm42 = vcmp.eq.s32.totalorder %v41, 0
    %v43 = vsel %vm42, 1, 0
    %vm44 = vcmp.eq.s32.totalorder %v43, 1
    %v45 = vsel %vm44, %v38, %v40
    %v46 = vadd.f32 %v36, %v45
    %47 = vrot.lane.b32.xlu0 %v46, 124
    %v48 = vpop.permute.xlu0 %47
    %49 = vrot.lane.b32.xlu0 %v46, 4
    %v50 = vpop.permute.xlu0 %49
    %v51 = vand.u32 %v26, 4
    %vm52 = vcmp.eq.s32.totalorder %v51, 0
    %v53 = vsel %vm52, 1, 0
    %vm54 = vcmp.eq.s32.totalorder %v53, 1
    %v55 = vsel %vm54, %v48, %v50
    %v56 = vadd.f32 %v46, %v55
    %v57 = vrsqrt.pop %v56
    %v58 = vmul.f32 %v57, %v56
    %v59 = vmul.f32 %v58, %v57
    %v60 = vmul.f32 0.5, %v59
    %v61 = vsub.f32 1.5, %v60
    %v62 = vmul.f32 %v57, %v61
    %v63 = vmul.f32 %v56, %v62
    %vm64 = vcmp.eq.f32.partialorder %v56, inf
    %v65 = vsel %vm64, %v56, %v63
    %vm66 = vcmp.eq.f32.partialorder %v56, 0.0
    %v67 = vand.u32 %v56, 2147483648
    %v68 = vsel %vm66, %v67, %v65
    %v69 = vrcp.pop %v68
    %v70 = vmul.f32 %v68, %v69
    %v71 = vsub.f32 1.0, %v70
    %v72 = vmul.f32 %v69, %v71
    %v73 = vadd.f32 %v69, %v72
    %vm74 = vweird.f32 %v68
    %vm75 = vweird.f32 %v69
    %vm76 = vmor %vm74, %vm75
    %v77 = vsel %vm76, %v69, %v73
    %v78 = vand.u32 2147483647, %v68
    %vm79 = vcmp.eq.f32.partialorder %v78, 8.507059e+37
    %v80 = vand.u32 %v68, 2147483648
    %v81 = vor.u32 1.1754944e-38, %v80
    %v82 = vsel %vm79, %v81, %v77
    %v83 = vmul.f32 15.0, %v82
    %v84 = vmin.f32 %v83, 1.0
    %v85 = vmul.f32 %v23, %v84
    %86 = vst [vmem:[#allocation5] sm:$0x3] %v85
    // Predicated region
    $region10: #{tpu_custom_call.1} parent=1 // pred_check
      _
    $region11: #{tpu_custom_call.1} parent=1 // pred_check_branch
      %88 = sbr.rel (0) target = $region13
    $region12: #{tpu_custom_call.1} parent=1 // pred_region
      %90 = vsyncadd [#allocation4], 0
      %s92 = sshll.u32 [#allocation5], 4
      %s93 = int_to_ptr.vmem [resolvable:$true] %s92
      %s94 = sshll.u32 %s1, 4
      %s95 = int_to_ptr.hbm [resolvable:$true] %s94
      %97 = dma.vmem_to_hbm [thread:$0]  %s93, 32, %s95, [#allocation4]
    $region13: #{tpu_custom_call.1} parent=1 // pred_fallthru
      _
    // Predicated region
    $region14: #{tpu_custom_call.1} parent=1 // pred_check
      _
    $region15: #{tpu_custom_call.1} parent=1 // pred_check_branch
      %99 = sbr.rel (0) target = $region17
    $region16: #{tpu_custom_call.1} parent=1 // pred_region
      %101 = dma.done [#allocation4], 32
    $region17: #{tpu_custom_call.1} parent=1 // pred_fallthru
      _
    %102 = vsyncpa [#allocation3], 1
    %103 = vsyncpa [#allocation4], 1

</llo_original>
